<compile_context>
chip_gen: v7x
topology: tpu7x:2x2x1
jax: 0.10.0
libtpu: 0.0.40
codegen_flags: <defaults>
</compile_context>

<pallas_src>
import functools

import jax
import jax.numpy as jnp
from jax.experimental import pallas as pl
from jax.experimental.pallas import tpu as pltpu


def _round_up(v, m):
    return (v + m - 1) // m * m


def _self_attn1d_kernel(x_ref, w_ref, b_ref, out_ref):
    """x tile (tb, C); W' panel (C, tn); bias panel (1, tn); out tile (tb, tn)."""
    x = x_ref[...].astype(w_ref.dtype)          # in-kernel cast (VPU slot has slack)
    acc = jnp.dot(x, w_ref[...], preferred_element_type=jnp.float32)
    out_ref[...] = (acc + b_ref[...]).astype(out_ref.dtype)


def pack_params(wv, bv, gamma, *, matmul_dtype=jnp.float32):
    """Pre-pack the value-conv parameters ONCE.

    wv: (C, C) Conv1d ks=1 weight (trailing 1 squeezed); bv: (C,); gamma: scalar.
    Folds gamma and the residual identity and zero-pads the output channels to
    a multiple of 128:
        out = x @ W' + b'   with   W' = gamma*Wv^T + I  (C, Cp),
                                   b' = gamma*bv        (1, Cp).
    For v6e/v7x pass matmul_dtype=jnp.bfloat16 (native MXU path, half the
    weight DMA/VMEM); accumulation stays f32 inside the kernel.
    """
    wv = jnp.asarray(wv, jnp.float32)
    bv = jnp.asarray(bv, jnp.float32)
    gamma = jnp.asarray(gamma, jnp.float32).reshape(())
    c_out, c_in = wv.shape
    assert c_out == c_in, "value_conv is C->C for this module"
    C = c_in
    Cp = _round_up(max(C, 128), 128)            # lane-dense output width
    w_folded = gamma * wv.T + jnp.eye(C, dtype=jnp.float32)
    w_packed = jnp.zeros((C, Cp), jnp.float32).at[:, :C].set(w_folded)
    b_packed = jnp.zeros((1, Cp), jnp.float32).at[0, :C].set(gamma * bv)
    return w_packed.astype(matmul_dtype), b_packed


@functools.partial(jax.jit, static_argnames=("block_b", "block_n"))
def self_attn1d(x, w_packed, b_packed, *, block_b=512, block_n=2048):
    """x: (B, C); w_packed: (C, Cp); b_packed: (1, Cp) from pack_params.

    Returns (out (B, C), attention (B, 1, 1)) matching the PyTorch module.
    """
    B, C = x.shape
    c_in, Cp = w_packed.shape
    assert c_in == C and Cp % 128 == 0

    # Output-channel (N) tiling keeps each weight panel a few MiB so it stays
    # VMEM-resident even for large C (v7x: 64 MiB physical VMEM).
    tn = min(Cp, _round_up(block_n, 128))
    grid_n = pl.cdiv(Cp, tn)

    # Batch tiling: >= 2 grid steps once B > 16 so the "parallel" axis can
    # shard across v7x's two TensorCores; tiles are multiples of 8 sublanes.
    if B <= 16:
        tb = B
    else:
        tb = min(block_b, _round_up(pl.cdiv(B, 2), 8))
    x_bytes = jnp.dtype(x.dtype).itemsize
    o_bytes = x_bytes
    w_bytes = jnp.dtype(w_packed.dtype).itemsize
    # Keep double-buffered x+out tiles within ~24 MiB (v5e headroom).
    while tb > 8 and 2 * tb * (C * x_bytes + tn * o_bytes) > (24 << 20):
        tb = max(8, tb // 2)
    grid_b = pl.cdiv(B, tb)

    # Grid-constant weight/bias blocks only need a single buffer.
    n_wbuf = 1 if grid_n == 1 else 2
    if grid_n == 1:
        w_spec = pl.BlockSpec((C, tn), lambda i, j: (0, j),
                              pipeline_mode=pl.Buffered(1))
        b_spec = pl.BlockSpec((1, tn), lambda i, j: (0, j),
                              pipeline_mode=pl.Buffered(1))
    else:
        w_spec = pl.BlockSpec((C, tn), lambda i, j: (0, j))
        b_spec = pl.BlockSpec((1, tn), lambda i, j: (0, j))

    # Explicit scoped-VMEM budget (defaults are only 16/32 MiB).
    vmem_bytes = (2 * tb * C * x_bytes            # x tile, double-buffered
                  + n_wbuf * C * tn * w_bytes     # weight panel(s)
                  + n_wbuf * 8 * tn * 4           # bias panel(s), sublane-padded
                  + 2 * tb * tn * o_bytes)        # out tile, double-buffered
    vmem_bytes = max(16 << 20, min(int(vmem_bytes * 1.5) + (2 << 20), 120 << 20))

    out_padded = pl.pallas_call(
        _self_attn1d_kernel,
        out_shape=jax.ShapeDtypeStruct((B, Cp), x.dtype),
        grid=(grid_b, grid_n),
        in_specs=[
            pl.BlockSpec((tb, C), lambda i, j: (i, 0)),   # x: batch-tiled
            w_spec,                                        # W' panel
            b_spec,                                        # bias panel
        ],
        out_specs=pl.BlockSpec((tb, tn), lambda i, j: (i, j)),
        compiler_params=pltpu.CompilerParams(
            dimension_semantics=("parallel", "parallel"),
            vmem_limit_bytes=vmem_bytes),
    )(x, w_packed, b_packed)

    out = out_padded if Cp == C else out_padded[:, :C]
    # softmax over a size-1 axis == 1.0 exactly -> constant attention map.
    attn = jnp.ones((B, 1, 1), x.dtype)
    return out, attn


def self_attn1d_ref(x, wq, bq, wk, bk, wv, bv, gamma):
    """Pure-JAX reference mirroring the full PyTorch forward (incl. q/k/softmax)."""
    mm = lambda a, b: jnp.matmul(a, b, precision="highest")
    q = mm(x, wq.T) + bq                                    # (B, Cq)
    k = mm(x, wk.T) + bk                                    # (B, Cq)
    v = mm(x, wv.T) + bv                                    # (B, C)
    energy = jnp.sum(q * k, axis=-1, keepdims=True)         # (B, 1) == bmm for T==1
    attn = jax.nn.softmax(energy, axis=-1)                  # size-1 axis -> ones
    out = gamma * (v * attn) + x
    return out, attn.reshape(x.shape[0], 1, 1)


if __name__ == "__main__":
    # ---- Test 1: module config at small shape (in_dim=C=32, k=8). ----
    B, C, k = 4, 32, 8
    Cq = C // k

    key = jax.random.PRNGKey(0)
    kx, k1, k2, k3, k4, k5, k6 = jax.random.split(key, 7)
    x = jax.random.normal(kx, (B, C), dtype=jnp.float32)
    wq = jax.random.normal(k1, (Cq, C), dtype=jnp.float32) * 0.1
    bq = jax.random.normal(k2, (Cq,), dtype=jnp.float32) * 0.1
    wk = jax.random.normal(k3, (Cq, C), dtype=jnp.float32) * 0.1
    bk = jax.random.normal(k4, (Cq,), dtype=jnp.float32) * 0.1
    wv = jax.random.normal(k5, (C, C), dtype=jnp.float32) * 0.1
    bv = jax.random.normal(k6, (C,), dtype=jnp.float32) * 0.1
    gamma = jnp.float32(0.37)   # non-zero so the matmul path is exercised

    w_p, b_p = pack_params(wv, bv, gamma)                    # f32 (exact) path
    out, attn = self_attn1d(x, w_p, b_p)
    jax.block_until_ready(out)
    jax.block_until_ready(attn)

    out_ref, attn_ref = self_attn1d_ref(x, wq, bq, wk, bk, wv, bv, gamma)
    assert out.shape == (B, C) and attn.shape == (B, 1, 1)
    assert jnp.allclose(out, out_ref, atol=1e-4, rtol=1e-4)
    assert jnp.array_equal(attn, attn_ref)                   # both exactly ones

    # bf16-weight fast path (v6e/v7x native MXU) -> relaxed tolerance.
    w_bf, b_bf = pack_params(wv, bv, gamma, matmul_dtype=jnp.bfloat16)
    out_bf, _ = self_attn1d(x, w_bf, b_bf)
    jax.block_until_ready(out_bf)
    assert jnp.allclose(out_bf, out_ref, atol=5e-2, rtol=5e-2)

    # gamma == 0 (the module's initialization) -> out == x (identity matmul).
    w0, b0 = pack_params(wv, bv, jnp.float32(0.0))
    out0, _ = self_attn1d(x, w0, b0)
    jax.block_until_ready(out0)
    assert jnp.allclose(out0, x, atol=1e-5, rtol=0.0)

    # ---- Test 2: multi-block grid (batch-tiled + N-tiled weight panels). ----
    B2, C2 = 48, 256
    kx2, kw2, kb2 = jax.random.split(jax.random.PRNGKey(1), 3)
    x2 = jax.random.normal(kx2, (B2, C2), dtype=jnp.float32)
    wv2 = jax.random.normal(kw2, (C2, C2), dtype=jnp.float32) * 0.05
    bv2 = jax.random.normal(kb2, (C2,), dtype=jnp.float32) * 0.05
    w2, bb2 = pack_params(wv2, bv2, gamma)
    out2, attn2 = self_attn1d(x2, w2, bb2, block_b=512, block_n=128)  # grid=(2, 2)
    jax.block_until_ready(out2)
    ref2 = gamma * (jnp.matmul(x2, wv2.T, precision="highest") + bv2) + x2
    assert out2.shape == (B2, C2) and attn2.shape == (B2, 1, 1)
    assert jnp.allclose(out2, ref2, atol=1e-4, rtol=1e-4)

    print("KERNEL_OK")
</pallas_src>

<mosaic_0001>
module attributes {stable_mosaic.version = 11 : i64} {
  func.func @_self_attn1d_kernel(%arg0: i32, %arg1: i32, %arg2: memref<4x32xf32, #tpu.memory_space<vmem>>, %arg3: memref<32x128xf32, #tpu.memory_space<vmem>>, %arg4: memref<1x128xf32, #tpu.memory_space<vmem>>, %arg5: memref<4x128xf32, #tpu.memory_space<vmem>>) attributes {dimension_semantics = [#tpu.dimension_semantics<parallel>, #tpu.dimension_semantics<parallel>], iteration_bounds = array<i64: 1, 1>, scalar_prefetch = 0 : i64, scratch_operands = 0 : i64, tpu.core_type = #tpu.core_type<tc>, window_params = [{transform_indices = @transform_0, window_bounds = array<i64: 4, 32>}, {pipeline_mode = #tpu.pipeline_mode<synchronous>, transform_indices = @transform_1, window_bounds = array<i64: 32, 128>}, {pipeline_mode = #tpu.pipeline_mode<synchronous>, transform_indices = @transform_2, window_bounds = array<i64: 1, 128>}, {transform_indices = @transform_3, window_bounds = array<i64: 4, 128>}]} {
    %c0 = arith.constant 0 : index
    %c0_0 = arith.constant 0 : index
    %0 = vector.load %arg2[%c0, %c0_0] : memref<4x32xf32, #tpu.memory_space<vmem>>, vector<4x32xf32>
    %c0_1 = arith.constant 0 : index
    %c0_2 = arith.constant 0 : index
    %1 = vector.load %arg3[%c0_1, %c0_2] : memref<32x128xf32, #tpu.memory_space<vmem>>, vector<32x128xf32>
    %cst = arith.constant dense<0.000000e+00> : vector<4x128xf32>
    %2 = tpu.matmul %0, %1, %cst {dimension_numbers = #tpu.dot_dimension_numbers<[1], [0], [0], [1], [0, 0, 1, 1], [], []>} : vector<4x32xf32>, vector<32x128xf32>, vector<4x128xf32> -> vector<4x128xf32>
    %c0_3 = arith.constant 0 : index
    %c0_4 = arith.constant 0 : index
    %3 = vector.load %arg4[%c0_3, %c0_4] : memref<1x128xf32, #tpu.memory_space<vmem>>, vector<1x128xf32>
    %4 = vector.broadcast %3 : vector<1x128xf32> to vector<4x128xf32>
    %5 = arith.addf %2, %4 : vector<4x128xf32>
    %c0_5 = arith.constant 0 : index
    %c0_6 = arith.constant 0 : index
    %6 = vector.load %arg5[%c0_5, %c0_6] : memref<4x128xf32, #tpu.memory_space<vmem>>, vector<4x128xf32>
    tpu.vector_store %arg5[%c0_5, %c0_6], %5 {strides = array<i32>} : memref<4x128xf32, #tpu.memory_space<vmem>>, vector<4x128xf32>,
    return
  }
  func.func @transform_0(%arg0: i32, %arg1: i32) -> (i32, i32) {
    %c0_i32 = arith.constant 0 : i32
    %c0_i32_0 = arith.constant 0 : i32
    return %arg0, %c0_i32 : i32, i32
  }
  func.func @transform_1(%arg0: i32, %arg1: i32) -> (i32, i32) {
    %c0_i32 = arith.constant 0 : i32
    %c0_i32_0 = arith.constant 0 : i32
    return %c0_i32, %arg1 : i32, i32
  }
  func.func @transform_2(%arg0: i32, %arg1: i32) -> (i32, i32) {
    %c0_i32 = arith.constant 0 : i32
    %c0_i32_0 = arith.constant 0 : i32
    return %c0_i32, %arg1 : i32, i32
  }
  func.func @transform_3(%arg0: i32, %arg1: i32) -> (i32, i32) {
    %c0_i32 = arith.constant 0 : i32
    return %arg0, %arg1 : i32, i32
  }
}

</mosaic_0001>

<llo_original>
// kernel: self_attn1d.1
$region0: #{self_attn1d.1}
  #allocation0 [shape = 'u32[]', space=smem, size = 0x4, offset = 0x4, fixed_abs, tag = 'smem constant byte address 0x4 - core index']
  #allocation1 [shape = 'u32[144,128]{1,0:T(1,128)}', space=vmem, size = 0x12000, scoped, tag = 'internal scratch']
  %s0 = inlined_call_operand.hbm [shape: f32[4,32], index: 0, kind: input, shape index: {}]
  %s1 = inlined_call_operand.hbm [shape: f32[32,128], index: 1, kind: input, shape index: {}]
  %s2 = inlined_call_operand.vmem [shape: f32[1,128], index: 2, kind: input, shape index: {}]
  %s3 = inlined_call_operand.hbm [shape: f32[4,128], index: 3, kind: output, shape index: {}]
  %s4 = sld [smem:[#allocation0]]
  $region30: #{self_attn1d.1} parent=0
    _
  %s6 = ssub.s32 1, %s4
  %s7 = scalar_select 0, %s6, %s4
  $region1: #{self_attn1d.1} parent=0
    #allocation2 [shape = 'u8[2048]{0}', space=vmem, size = 0x800, scoped, tag = 'input window, operand 0, single buffered']
    #allocation3 [shape = 's32[1]{0}', space=sflag, size = 0x4, scoped, tag = 'scoped memory for self_attn1d.1']
    #allocation4 [shape = 's32[1]{0}', space=sflag, size = 0x4, scoped, tag = 'scoped memory for self_attn1d.1']
    #allocation5 [shape = 'u8[16384]{0}', space=vmem, size = 0x4000, scoped, tag = 'input window, operand 1, single buffered']
    #allocation6 [shape = 's32[1]{0}', space=sflag, size = 0x4, scoped, tag = 'scoped memory for self_attn1d.1']
    #allocation7 [shape = 'u8[2048]{0}', space=vmem, size = 0x800, scoped, tag = 'output window, operand 0, single buffered']
    %8 = vsyncpa [#allocation3], 0
    %9 = vsyncpa [#allocation6], 0
    %10 = vsyncpa [#allocation4], 0
    // Predicated region
    $region2: #{self_attn1d.1} parent=1 // pred_check
      _
    $region3: #{self_attn1d.1} parent=1 // pred_check_branch
      %12 = sbr.rel (0) target = $region5
    $region4: #{self_attn1d.1} parent=1 // pred_region
      %s14 = ssub.s32 64, 64
      %15 = vsyncadd [#allocation3], %s14
      %s17 = sshll.u32 [#allocation2], 4
      %s18 = int_to_ptr.vmem [resolvable:$true] %s17
      %20 = dma.hbm_to_vmem [thread:$0]  %s0, 64, %s18, [#allocation3]
    $region5: #{self_attn1d.1} parent=1 // pred_fallthru
      _
    // Predicated region
    $region6: #{self_attn1d.1} parent=1 // pred_check
      _
    $region7: #{self_attn1d.1} parent=1 // pred_check_branch
      %22 = sbr.rel (0) target = $region9
    $region8: #{self_attn1d.1} parent=1 // pred_region
      %s24 = ssub.s32 512, 512
      %25 = vsyncadd [#allocation6], %s24
      %s26 = sshll.u32 [#allocation5], 4
      %s27 = int_to_ptr.vmem [resolvable:$true] %s26
      %32 = dma.hbm_to_vmem [thread:$0]  %s1, 512, %s27, [#allocation6], 128, 128, 8
    $region9: #{self_attn1d.1} parent=1 // pred_fallthru
      _
    // Predicated region
    $region10: #{self_attn1d.1} parent=1 // pred_check
      _
    $region11: #{self_attn1d.1} parent=1 // pred_check_branch
      %34 = sbr.rel (0) target = $region13
    $region12: #{self_attn1d.1} parent=1 // pred_region
      _
    $region13: #{self_attn1d.1} parent=1 // pred_fallthru
      _
    // Predicated region
    $region14: #{self_attn1d.1} parent=1 // pred_check
      _
    $region15: #{self_attn1d.1} parent=1 // pred_check_branch
      %36 = sbr.rel (0) target = $region17
    $region16: #{self_attn1d.1} parent=1 // pred_region
      %37 = dma.done [#allocation3], 64
    $region17: #{self_attn1d.1} parent=1 // pred_fallthru
      _
    // Predicated region
    $region18: #{self_attn1d.1} parent=1 // pred_check
      _
    $region19: #{self_attn1d.1} parent=1 // pred_check_branch
      %39 = sbr.rel (0) target = $region21
    $region20: #{self_attn1d.1} parent=1 // pred_region
      %40 = dma.done [#allocation6], 512
    $region21: #{self_attn1d.1} parent=1 // pred_fallthru
      _
    %v41 = vld [vmem:[#allocation2] sm:$0xf]
    %v42 = vld [vmem:[#allocation5] sm:$0xff]
    %v43 = vld [vmem:[#allocation5 + $0x8] sm:$0xff]
    %v44 = vld [vmem:[#allocation5 + $0x10] sm:$0xff]
    %v45 = vld [vmem:[#allocation5 + $0x18] sm:$0xff]
    %v46 = vld [vmem:[%s2] sm:$0x1]
    %v48 = vlaneseq
    %v49 = vshrl.u32 %v48, 7
    %v50 = vsub.s32 0, %v49
    %v51 = vrot.slane %v46, %v50
    %vm53 = vcmask 261120
    %v55 = vsel %vm53, %v41, 0
    %57 = vmatprep.subr.mxu0 0.0
    %58 = vmatpush1.msra.mxu0 %v42
    %59 = vmatprep.subr.mxu0 0.0
    %60 = vmatpush1.msra.mxu0 %v43
    %61 = vmatprep.subr.mxu0 0.0
    %62 = vmatpush1.msra.mxu0 %v44
    %63 = vmatprep.subr.mxu0 0.0
    %64 = vmatpush1.msra.mxu0 %v45
    %65 = vmatprep.subr.mxu0 0.0
    %66 = vmatpush1.msra.mxu0 0.0
    %67 = vmatprep.subr.mxu0 0.0
    %68 = vmatpush1.msra.mxu0 0.0
    %69 = vmatprep.subr.mxu0 0.0
    %70 = vmatpush1.msra.mxu0 0.0
    %71 = vmatprep.subr.mxu0 0.0
    %72 = vmatpush1.msra.mxu0 0.0
    %73 = vmatprep.subr.mxu0 0.0
    %74 = vmatpush1.msra.mxu0 0.0
    %75 = vmatprep.subr.mxu0 0.0
    %76 = vmatpush1.msra.mxu0 0.0
    %77 = vmatprep.subr.mxu0 0.0
    %78 = vmatpush1.msra.mxu0 0.0
    %79 = vmatprep.subr.mxu0 0.0
    %80 = vmatpush1.msra.mxu0 0.0
    %81 = vmatprep.subr.mxu0 0.0
    %82 = vmatpush1.msra.mxu0 0.0
    %83 = vmatprep.subr.mxu0 0.0
    %84 = vmatpush1.msra.mxu0 0.0
    %85 = vmatprep.subr.mxu0 0.0
    %86 = vmatpush1.msra.mxu0 0.0
    %87 = vmatprep.subr.mxu0 0.0
    %88 = vmatpush1.msra.mxu0 0.0
    %89 = vmatprep.subr.mxu0 0.0
    %90 = vmatpush1.msra.mxu0 0.0
    %91 = vmatprep.subr.mxu0 0.0
    %92 = vmatpush1.msra.mxu0 0.0
    %93 = vmatprep.subr.mxu0 0.0
    %94 = vmatpush1.msra.mxu0 0.0
    %95 = vmatprep.subr.mxu0 0.0
    %96 = vmatpush1.msra.mxu0 0.0
    %97 = vmatprep.subr.mxu0 0.0
    %98 = vmatpush1.msra.mxu0 0.0
    %99 = vmatprep.subr.mxu0 0.0
    %100 = vmatpush1.msra.mxu0 0.0
    %101 = vmatprep.subr.mxu0 0.0
    %102 = vmatpush1.msra.mxu0 0.0
    %103 = vmatprep.subr.mxu0 0.0
    %104 = vmatpush1.msra.mxu0 0.0
    %105 = vmatprep.subr.mxu0 0.0
    %106 = vmatpush1.msra.mxu0 0.0
    %107 = vmatprep.subr.mxu0 0.0
    %108 = vmatpush1.msra.mxu0 0.0
    %109 = vmatprep.subr.mxu0 0.0
    %110 = vmatpush1.msra.mxu0 0.0
    %111 = vmatprep.subr.mxu0 0.0
    %112 = vmatpush1.msra.mxu0 0.0
    %113 = vmatprep.subr.mxu0 0.0
    %114 = vmatpush1.msra.mxu0 0.0
    %115 = vmatprep.subr.mxu0 0.0
    %116 = vmatpush1.msra.mxu0 0.0
    %117 = vmatprep.subr.mxu0 0.0
    %118 = vmatpush1.msra.mxu0 0.0
    %119 = vmatprep.subr.mxu0 0.0
    %120 = vmatpush1.msra.mxu0 0.0
    %121 = vmatprep.mubr.f32.mxu0 0.0
    %122 = vmatmul.mubr.f32.gmra.mrb[0].mxu0 %v55
    %v123 = vpop.f32.mrb[0].mxu0
    %v124 = vadd.f32 %v51, %v123
    %v125 = vpop.f32.mrb[0].mxu0
    %126 = vdwg.mxu0
    %127 = vst [vmem:[#allocation7] sm:$0xf] %v124
    // Predicated region
    $region22: #{self_attn1d.1} parent=1 // pred_check
      _
    $region23: #{self_attn1d.1} parent=1 // pred_check_branch
      %129 = sbr.rel (0) target = $region25
    $region24: #{self_attn1d.1} parent=1 // pred_region
      %s131 = ssub.s32 64, 64
      %132 = vsyncadd [#allocation4], %s131
      %s134 = sshll.u32 [#allocation7], 4
      %s135 = int_to_ptr.vmem [resolvable:$true] %s134
      %137 = dma.vmem_to_hbm [thread:$0]  %s135, 64, %s3, [#allocation4]
    $region25: #{self_attn1d.1} parent=1 // pred_fallthru
      _
    // Predicated region
    $region26: #{self_attn1d.1} parent=1 // pred_check
      _
    $region27: #{self_attn1d.1} parent=1 // pred_check_branch
      %139 = sbr.rel (0) target = $region29
    $region28: #{self_attn1d.1} parent=1 // pred_region
      %140 = dma.done [#allocation4], 64
    $region29: #{self_attn1d.1} parent=1 // pred_fallthru
      _
    %141 = vsyncpa [#allocation3], 1
    %142 = vsyncpa [#allocation6], 1
    %143 = vsyncpa [#allocation4], 1

</llo_original>
